<compile_context>
chip_gen: v7x
topology: tpu7x:2x2x1
jax: 0.10.0
libtpu: 0.0.40
codegen_flags: <defaults>
</compile_context>

<pallas_src>
import jax
import jax.numpy as jnp
from jax import lax
from jax.experimental import pallas as pl
from jax.experimental.pallas import tpu as pltpu

EPS = 1e-5


def _layernorm(x, gamma, beta):
    """x: (R, D) f32; gamma/beta: (1, D). Biased variance, eps=1e-5."""
    mu = jnp.mean(x, axis=-1, keepdims=True)
    xc = x - mu
    var = jnp.mean(xc * xc, axis=-1, keepdims=True)
    return xc * lax.rsqrt(var + EPS) * gamma + beta


def _make_kernel(emb_dim, fused_qkv, matmul_dtype):
    E = emb_dim

    def _mm(t):
        # Cast matmul operands only (stats stay f32); identity when None.
        return t if matmul_dtype is None else t.astype(matmul_dtype)

    def kernel(*refs):
        if fused_qkv:
            (x_ref, wqkv_ref, wproj_ref,
             g_in_ref, b_in_ref, g_out_ref, b_out_ref, o_ref) = refs
        else:
            (x_ref, wq_ref, wk_ref, wv_ref, wproj_ref,
             g_in_ref, b_in_ref, g_out_ref, b_out_ref, o_ref) = refs

        BT, N, C = x_ref.shape

        # ---- LayerNorm over in_dim on BT*N stacked rows (fills MXU M) -----
        x = x_ref[...].reshape(BT * N, C)
        xn = _layernorm(x, g_in_ref[...], b_in_ref[...])
        xm = _mm(xn)

        # ---- QKV projection (no bias) --------------------------------------
        if fused_qkv:
            # One (BT*N, C) x (C, 3E) MXU pass; slices are lane-tile aligned.
            qkv = jnp.dot(xm, _mm(wqkv_ref[...]),
                          preferred_element_type=jnp.float32)
            q = qkv[:, :E]
            k = qkv[:, E:2 * E]
            v = qkv[:, 2 * E:]
        else:
            # E not a multiple of 128: keep three dots on pre-split weights to
            # avoid sub-lane-tile slicing of the fused product.
            q = jnp.dot(xm, _mm(wq_ref[...]), preferred_element_type=jnp.float32)
            k = jnp.dot(xm, _mm(wk_ref[...]), preferred_element_type=jnp.float32)
            v = jnp.dot(xm, _mm(wv_ref[...]), preferred_element_type=jnp.float32)

        # ---- phi_q = softmax over emb dim (last axis) -----------------------
        # approx reciprocal (EUP slot) is safe: a per-row scale error is
        # removed exactly by the output LayerNorm below.
        q_max = jnp.max(q, axis=-1, keepdims=True)
        q_exp = jnp.exp(q - q_max)
        phi_q = q_exp * pl.reciprocal(
            jnp.sum(q_exp, axis=-1, keepdims=True), approx=True)

        # ---- phi_k = softmax over the sequence axis, per batch element ------
        k3 = k.reshape(BT, N, E)
        v3 = v.reshape(BT, N, E)
        k_max = jnp.max(k3, axis=1, keepdims=True)            # (BT, 1, E)
        k_exp = jnp.exp(k3 - k_max)
        phi_k = k_exp * pl.reciprocal(
            jnp.sum(k_exp, axis=1, keepdims=True), approx=False)

        # ---- kv = phi_k^T @ v : contraction over N expressed directly ------
        kv = jnp.einsum('bne,bnf->bef', _mm(phi_k), _mm(v3),
                        preferred_element_type=jnp.float32)   # (BT, E, E)

        # ---- attn = phi_q @ kv ----------------------------------------------
        attn = jnp.einsum('bne,bef->bnf',
                          _mm(phi_q.reshape(BT, N, E)), _mm(kv),
                          preferred_element_type=jnp.float32)  # (BT, N, E)

        # ---- LayerNorm over emb_dim + output projection (no bias) ----------
        attn_n = _layernorm(attn.reshape(BT * N, E),
                            g_out_ref[...], b_out_ref[...])
        out = jnp.dot(_mm(attn_n), _mm(wproj_ref[...]),
                      preferred_element_type=jnp.float32)      # (BT*N, C)
        o_ref[...] = out.reshape(BT, N, C).astype(o_ref.dtype)

    return kernel


def prepare_params(w_qkv, w_proj, gamma_in, beta_in, gamma_out, beta_out):
    """One-time parameter preparation (hoisted out of the forward hot path).

    `w_qkv` is the (in_dim, 3*emb_dim) matrix applied as x @ w_qkv (i.e. the
    transpose of the PyTorch nn.Linear weight).  Its columns are interleaved
    q0,k0,v0,q1,... exactly like the PyTorch reshape(B,N,E,3); we de-interleave
    them once into contiguous [q | k | v].  Keeps a single fused (C, 3E)
    weight when emb_dim is lane-tile aligned (multiple of 128), else three
    (C, E) weights.
    """
    C, three_e = w_qkv.shape
    E = three_e // 3
    wq, wk, wv = w_qkv[:, 0::3], w_qkv[:, 1::3], w_qkv[:, 2::3]
    fused = (E % 128 == 0)
    qkv_w = (jnp.concatenate([wq, wk, wv], axis=1),) if fused else (wq, wk, wv)
    return {
        'qkv_weights': tuple(jnp.asarray(w) for w in qkv_w),
        'fused_qkv': fused,
        'w_proj': jnp.asarray(w_proj),
        'g_in': jnp.asarray(gamma_in).reshape(1, C),
        'b_in': jnp.asarray(beta_in).reshape(1, C),
        'g_out': jnp.asarray(gamma_out).reshape(1, E),
        'b_out': jnp.asarray(beta_out).reshape(1, E),
        'in_dim': C,
        'emb_dim': E,
    }


def _pick_batch_tile(B, N, C, E):
    """Stack batch elements per grid step: amortize per-step overhead and give
    the MXU hundreds of rows, while keeping f32 intermediates inside the
    smallest default scoped-VMEM budget (v5e: 16 MiB)."""
    target_rows = 512
    bt = max(1, min(B, target_rows // max(N, 1)))
    budget = 8 * 2**20                     # ~8 MiB for live intermediates
    per_elem = 4 * (12 * N * max(C, E) + E * E)
    bt = max(1, min(bt, budget // max(per_elem, 1)))
    while B % bt:
        bt -= 1
    return bt


def linear_channel_attention(x, params, matmul_dtype=None):
    """x: (B, N, C) float32; params: output of prepare_params()."""
    B, N, C = x.shape
    E = params['emb_dim']
    assert C == params['in_dim']
    fused = params['fused_qkv']
    qkv_w = params['qkv_weights']

    bt = _pick_batch_tile(B, N, C, E)
    grid = (B // bt,)

    kernel = _make_kernel(E, fused, matmul_dtype)

    const2d = lambda b: (0, 0)
    w_specs = [pl.BlockSpec(w.shape, const2d) for w in qkv_w]

    # Advisory cost estimate for XLA's scheduler.
    flops = 2 * B * N * (C * 3 * E + 2 * E * E + E * C)
    transcendentals = 2 * B * N * E + 2 * B * N
    bytes_accessed = 4 * (2 * B * N * C + C * 3 * E + E * C + 2 * C + 2 * E)

    # Explicit VMEM budget; only raise the scoped limit when needed.
    est = 4 * (4 * bt * N * C                                    # x + out (2x buf)
               + 2 * (C * 3 * E + E * C + 2 * C + 2 * E)         # weights (2x buf)
               + 12 * bt * N * max(C, E) + bt * E * E)           # intermediates
    vmem_limit = int(min(2 * est, 60 * 2**20)) if 2 * est > (16 << 20) else None

    return pl.pallas_call(
        kernel,
        out_shape=jax.ShapeDtypeStruct((B, N, C), x.dtype),
        grid_spec=pltpu.PrefetchScalarGridSpec(
            num_scalar_prefetch=0,
            grid=grid,
            in_specs=([pl.BlockSpec((bt, N, C), lambda b: (b, 0, 0))]   # x
                      + w_specs                                         # Wqkv
                      + [pl.BlockSpec((E, C), const2d),                 # Wproj
                         pl.BlockSpec((1, C), const2d),                 # gamma_in
                         pl.BlockSpec((1, C), const2d),                 # beta_in
                         pl.BlockSpec((1, E), const2d),                 # gamma_out
                         pl.BlockSpec((1, E), const2d)]),               # beta_out
            out_specs=pl.BlockSpec((bt, N, C), lambda b: (b, 0, 0)),
        ),
        compiler_params=pltpu.CompilerParams(
            dimension_semantics=("parallel",),
            vmem_limit_bytes=vmem_limit),
        cost_estimate=pl.CostEstimate(
            flops=flops, transcendentals=transcendentals,
            bytes_accessed=bytes_accessed),
    )(x, *qkv_w, params['w_proj'], params['g_in'], params['b_in'],
      params['g_out'], params['b_out'])


def _reference(x, w_qkv, w_proj, gamma_in, beta_in, gamma_out, beta_out):
    """Pure-JAX replica of the PyTorch forward, for validation."""
    B, N, C = x.shape
    E = w_proj.shape[0]

    def ln(t, g, b):
        mu = jnp.mean(t, -1, keepdims=True)
        var = jnp.mean((t - mu) ** 2, -1, keepdims=True)
        return (t - mu) / jnp.sqrt(var + EPS) * g + b

    xn = ln(x, gamma_in, beta_in)
    qkv = (xn @ w_qkv).reshape(B, N, E, 3)
    q, k, v = qkv[..., 0], qkv[..., 1], qkv[..., 2]
    phi_q = jax.nn.softmax(q, axis=2)
    phi_k = jax.nn.softmax(k, axis=1)
    kv = jnp.einsum('bne,bnf->bef', phi_k, v)
    attn = jnp.einsum('bne,bef->bnf', phi_q, kv)
    out = ln(attn, gamma_out, beta_out)
    return out @ w_proj


# TODO(synk): attn_drop / proj_drop are identity at the module's default
# p=0.0; training-mode dropout (RNG masking) is not implemented in-kernel.

if __name__ == "__main__":
    configs = [
        dict(B=2, N=8, C=32, E=32),     # split-QKV path (E not lane-aligned)
        dict(B=2, N=8, C=128, E=128),   # fused-QKV path, lane-dense output
    ]
    key = jax.random.PRNGKey(0)
    for cfg in configs:
        B, N, C, E = cfg['B'], cfg['N'], cfg['C'], cfg['E']
        key, kx, kw1, kw2, kg1, kb1, kg2, kb2 = jax.random.split(key, 8)

        x = jax.random.normal(kx, (B, N, C), dtype=jnp.float32)
        w_qkv = jax.random.normal(kw1, (C, 3 * E), jnp.float32) * (C ** -0.5)
        w_proj = jax.random.normal(kw2, (E, C), jnp.float32) * (E ** -0.5)
        gamma_in = 1.0 + 0.1 * jax.random.normal(kg1, (C,), jnp.float32)
        beta_in = 0.1 * jax.random.normal(kb1, (C,), jnp.float32)
        gamma_out = 1.0 + 0.1 * jax.random.normal(kg2, (E,), jnp.float32)
        beta_out = 0.1 * jax.random.normal(kb2, (E,), jnp.float32)

        params = prepare_params(w_qkv, w_proj, gamma_in, beta_in,
                                gamma_out, beta_out)
        out = jax.block_until_ready(linear_channel_attention(x, params))

        ref = _reference(x, w_qkv, w_proj, gamma_in, beta_in,
                         gamma_out, beta_out)
        assert out.shape == (B, N, C)
        assert jnp.allclose(out, ref, atol=2e-4, rtol=2e-4), \
            f"mismatch vs JAX reference for config {cfg}"

    print("KERNEL_OK")
</pallas_src>

<mosaic_0001>
module attributes {stable_mosaic.version = 11 : i64} {
  func.func @kernel(%arg0: i32, %arg1: memref<2x8x32xf32, #tpu.memory_space<vmem>>, %arg2: memref<32x32xf32, #tpu.memory_space<vmem>>, %arg3: memref<32x32xf32, #tpu.memory_space<vmem>>, %arg4: memref<32x32xf32, #tpu.memory_space<vmem>>, %arg5: memref<32x32xf32, #tpu.memory_space<vmem>>, %arg6: memref<1x32xf32, #tpu.memory_space<vmem>>, %arg7: memref<1x32xf32, #tpu.memory_space<vmem>>, %arg8: memref<1x32xf32, #tpu.memory_space<vmem>>, %arg9: memref<1x32xf32, #tpu.memory_space<vmem>>, %arg10: memref<2x8x32xf32, #tpu.memory_space<vmem>>) attributes {dimension_semantics = [#tpu.dimension_semantics<parallel>], iteration_bounds = array<i64: 1>, scalar_prefetch = 0 : i64, scratch_operands = 0 : i64, tpu.core_type = #tpu.core_type<tc>, window_params = [{transform_indices = @transform_0, window_bounds = array<i64: 2, 8, 32>}, {pipeline_mode = #tpu.pipeline_mode<synchronous>, transform_indices = @transform_1, window_bounds = array<i64: 32, 32>}, {pipeline_mode = #tpu.pipeline_mode<synchronous>, transform_indices = @transform_2, window_bounds = array<i64: 32, 32>}, {pipeline_mode = #tpu.pipeline_mode<synchronous>, transform_indices = @transform_3, window_bounds = array<i64: 32, 32>}, {pipeline_mode = #tpu.pipeline_mode<synchronous>, transform_indices = @transform_4, window_bounds = array<i64: 32, 32>}, {pipeline_mode = #tpu.pipeline_mode<synchronous>, transform_indices = @transform_5, window_bounds = array<i64: 1, 32>}, {pipeline_mode = #tpu.pipeline_mode<synchronous>, transform_indices = @transform_6, window_bounds = array<i64: 1, 32>}, {pipeline_mode = #tpu.pipeline_mode<synchronous>, transform_indices = @transform_7, window_bounds = array<i64: 1, 32>}, {pipeline_mode = #tpu.pipeline_mode<synchronous>, transform_indices = @transform_8, window_bounds = array<i64: 1, 32>}, {transform_indices = @transform_9, window_bounds = array<i64: 2, 8, 32>}]} {
    %c0 = arith.constant 0 : index
    %c0_0 = arith.constant 0 : index
    %c0_1 = arith.constant 0 : index
    %0 = vector.load %arg1[%c0, %c0_0, %c0_1] : memref<2x8x32xf32, #tpu.memory_space<vmem>>, vector<2x8x32xf32>
    %1 = vector.shape_cast %0 : vector<2x8x32xf32> to vector<16x32xf32>
    %c0_2 = arith.constant 0 : index
    %c0_3 = arith.constant 0 : index
    %2 = vector.load %arg6[%c0_2, %c0_3] : memref<1x32xf32, #tpu.memory_space<vmem>>, vector<1x32xf32>
    %c0_4 = arith.constant 0 : index
    %c0_5 = arith.constant 0 : index
    %3 = vector.load %arg7[%c0_4, %c0_5] : memref<1x32xf32, #tpu.memory_space<vmem>>, vector<1x32xf32>
    %cst = arith.constant dense<0.000000e+00> : vector<16xf32>
    %4 = vector.multi_reduction <add>, %1, %cst [1] : vector<16x32xf32> to vector<16xf32>
    %5 = vector.shape_cast %4 : vector<16xf32> to vector<16x1xf32>
    %cst_6 = arith.constant 3.200000e+01 : f32
    %6 = vector.broadcast %cst_6 : f32 to vector<16x1xf32>
    %7 = arith.divf %5, %6 : vector<16x1xf32>
    %8 = vector.broadcast %7 : vector<16x1xf32> to vector<16x32xf32>
    %9 = arith.subf %1, %8 : vector<16x32xf32>
    %10 = arith.mulf %9, %9 : vector<16x32xf32>
    %cst_7 = arith.constant dense<0.000000e+00> : vector<16xf32>
    %11 = vector.multi_reduction <add>, %10, %cst_7 [1] : vector<16x32xf32> to vector<16xf32>
    %12 = vector.shape_cast %11 : vector<16xf32> to vector<16x1xf32>
    %cst_8 = arith.constant 3.200000e+01 : f32
    %13 = vector.broadcast %cst_8 : f32 to vector<16x1xf32>
    %14 = arith.divf %12, %13 : vector<16x1xf32>
    %cst_9 = arith.constant 9.99999974E-6 : f32
    %15 = vector.broadcast %cst_9 : f32 to vector<16x1xf32>
    %16 = arith.addf %14, %15 : vector<16x1xf32>
    %17 = math.rsqrt %16 : vector<16x1xf32>
    %18 = vector.broadcast %17 : vector<16x1xf32> to vector<16x32xf32>
    %19 = arith.mulf %9, %18 : vector<16x32xf32>
    %20 = vector.broadcast %2 : vector<1x32xf32> to vector<16x32xf32>
    %21 = arith.mulf %19, %20 : vector<16x32xf32>
    %22 = vector.broadcast %3 : vector<1x32xf32> to vector<16x32xf32>
    %23 = arith.addf %21, %22 : vector<16x32xf32>
    %c0_10 = arith.constant 0 : index
    %c0_11 = arith.constant 0 : index
    %24 = vector.load %arg2[%c0_10, %c0_11] : memref<32x32xf32, #tpu.memory_space<vmem>>, vector<32x32xf32>
    %cst_12 = arith.constant dense<0.000000e+00> : vector<16x32xf32>
    %25 = tpu.matmul %23, %24, %cst_12 {dimension_numbers = #tpu.dot_dimension_numbers<[1], [0], [0], [1], [0, 0, 1, 1], [], []>} : vector<16x32xf32>, vector<32x32xf32>, vector<16x32xf32> -> vector<16x32xf32>
    %c0_13 = arith.constant 0 : index
    %c0_14 = arith.constant 0 : index
    %26 = vector.load %arg3[%c0_13, %c0_14] : memref<32x32xf32, #tpu.memory_space<vmem>>, vector<32x32xf32>
    %cst_15 = arith.constant dense<0.000000e+00> : vector<16x32xf32>
    %27 = tpu.matmul %23, %26, %cst_15 {dimension_numbers = #tpu.dot_dimension_numbers<[1], [0], [0], [1], [0, 0, 1, 1], [], []>} : vector<16x32xf32>, vector<32x32xf32>, vector<16x32xf32> -> vector<16x32xf32>
    %c0_16 = arith.constant 0 : index
    %c0_17 = arith.constant 0 : index
    %28 = vector.load %arg4[%c0_16, %c0_17] : memref<32x32xf32, #tpu.memory_space<vmem>>, vector<32x32xf32>
    %cst_18 = arith.constant dense<0.000000e+00> : vector<16x32xf32>
    %29 = tpu.matmul %23, %28, %cst_18 {dimension_numbers = #tpu.dot_dimension_numbers<[1], [0], [0], [1], [0, 0, 1, 1], [], []>} : vector<16x32xf32>, vector<32x32xf32>, vector<16x32xf32> -> vector<16x32xf32>
    %cst_19 = arith.constant dense<0xFF800000> : vector<16xf32>
    %30 = vector.multi_reduction <maximumf>, %25, %cst_19 [1] : vector<16x32xf32> to vector<16xf32>
    %31 = vector.shape_cast %30 : vector<16xf32> to vector<16x1xf32>
    %32 = vector.broadcast %31 : vector<16x1xf32> to vector<16x32xf32>
    %33 = arith.subf %25, %32 : vector<16x32xf32>
    %34 = math.exp %33 : vector<16x32xf32>
    %cst_20 = arith.constant dense<0.000000e+00> : vector<16xf32>
    %35 = vector.multi_reduction <add>, %34, %cst_20 [1] : vector<16x32xf32> to vector<16xf32>
    %36 = vector.shape_cast %35 : vector<16xf32> to vector<16x1xf32>
    %37 = tpu.reciprocal %36 {approx = true} : vector<16x1xf32> -> vector<16x1xf32>
    %38 = vector.broadcast %37 : vector<16x1xf32> to vector<16x32xf32>
    %39 = arith.mulf %34, %38 : vector<16x32xf32>
    %40 = vector.shape_cast %27 : vector<16x32xf32> to vector<2x8x32xf32>
    %41 = vector.shape_cast %29 : vector<16x32xf32> to vector<2x8x32xf32>
    %cst_21 = arith.constant dense<0xFF800000> : vector<2x32xf32>
    %42 = vector.multi_reduction <maximumf>, %40, %cst_21 [1] : vector<2x8x32xf32> to vector<2x32xf32>
    %43 = vector.shape_cast %42 : vector<2x32xf32> to vector<2x1x32xf32>
    %44 = vector.broadcast %43 : vector<2x1x32xf32> to vector<2x8x32xf32>
    %45 = arith.subf %40, %44 : vector<2x8x32xf32>
    %46 = math.exp %45 : vector<2x8x32xf32>
    %cst_22 = arith.constant dense<0.000000e+00> : vector<2x32xf32>
    %47 = vector.multi_reduction <add>, %46, %cst_22 [1] : vector<2x8x32xf32> to vector<2x32xf32>
    %48 = vector.shape_cast %47 : vector<2x32xf32> to vector<2x1x32xf32>
    %49 = tpu.reciprocal %48 : vector<2x1x32xf32> -> vector<2x1x32xf32>
    %50 = vector.broadcast %49 : vector<2x1x32xf32> to vector<2x8x32xf32>
    %51 = arith.mulf %46, %50 : vector<2x8x32xf32>
    "tpu.trace_start"() <{level = 10 : i32, message = "bne,bnf->bef"}> : () -> ()
    %cst_23 = arith.constant dense<0.000000e+00> : vector<2x32x32xf32>
    %52 = tpu.matmul %51, %41, %cst_23 {dimension_numbers = #tpu.dot_dimension_numbers<[1], [1], [2], [2], [0, 0, 0, 2, 1, 2], [0], [0]>} : vector<2x8x32xf32>, vector<2x8x32xf32>, vector<2x32x32xf32> -> vector<2x32x32xf32>
    "tpu.trace_stop"() : () -> ()
    %53 = vector.shape_cast %39 : vector<16x32xf32> to vector<2x8x32xf32>
    "tpu.trace_start"() <{level = 10 : i32, message = "bne,bef->bnf"}> : () -> ()
    %cst_24 = arith.constant dense<0.000000e+00> : vector<2x8x32xf32>
    %54 = tpu.matmul %53, %52, %cst_24 {dimension_numbers = #tpu.dot_dimension_numbers<[2], [1], [1], [2], [0, 0, 0, 1, 1, 2], [0], [0]>} : vector<2x8x32xf32>, vector<2x32x32xf32>, vector<2x8x32xf32> -> vector<2x8x32xf32>
    "tpu.trace_stop"() : () -> ()
    %55 = vector.shape_cast %54 : vector<2x8x32xf32> to vector<16x32xf32>
    %c0_25 = arith.constant 0 : index
    %c0_26 = arith.constant 0 : index
    %56 = vector.load %arg8[%c0_25, %c0_26] : memref<1x32xf32, #tpu.memory_space<vmem>>, vector<1x32xf32>
    %c0_27 = arith.constant 0 : index
    %c0_28 = arith.constant 0 : index
    %57 = vector.load %arg9[%c0_27, %c0_28] : memref<1x32xf32, #tpu.memory_space<vmem>>, vector<1x32xf32>
    %cst_29 = arith.constant dense<0.000000e+00> : vector<16xf32>
    %58 = vector.multi_reduction <add>, %55, %cst_29 [1] : vector<16x32xf32> to vector<16xf32>
    %59 = vector.shape_cast %58 : vector<16xf32> to vector<16x1xf32>
    %cst_30 = arith.constant 3.200000e+01 : f32
    %60 = vector.broadcast %cst_30 : f32 to vector<16x1xf32>
    %61 = arith.divf %59, %60 : vector<16x1xf32>
    %62 = vector.broadcast %61 : vector<16x1xf32> to vector<16x32xf32>
    %63 = arith.subf %55, %62 : vector<16x32xf32>
    %64 = arith.mulf %63, %63 : vector<16x32xf32>
    %cst_31 = arith.constant dense<0.000000e+00> : vector<16xf32>
    %65 = vector.multi_reduction <add>, %64, %cst_31 [1] : vector<16x32xf32> to vector<16xf32>
    %66 = vector.shape_cast %65 : vector<16xf32> to vector<16x1xf32>
    %cst_32 = arith.constant 3.200000e+01 : f32
    %67 = vector.broadcast %cst_32 : f32 to vector<16x1xf32>
    %68 = arith.divf %66, %67 : vector<16x1xf32>
    %cst_33 = arith.constant 9.99999974E-6 : f32
    %69 = vector.broadcast %cst_33 : f32 to vector<16x1xf32>
    %70 = arith.addf %68, %69 : vector<16x1xf32>
    %71 = math.rsqrt %70 : vector<16x1xf32>
    %72 = vector.broadcast %71 : vector<16x1xf32> to vector<16x32xf32>
    %73 = arith.mulf %63, %72 : vector<16x32xf32>
    %74 = vector.broadcast %56 : vector<1x32xf32> to vector<16x32xf32>
    %75 = arith.mulf %73, %74 : vector<16x32xf32>
    %76 = vector.broadcast %57 : vector<1x32xf32> to vector<16x32xf32>
    %77 = arith.addf %75, %76 : vector<16x32xf32>
    %c0_34 = arith.constant 0 : index
    %c0_35 = arith.constant 0 : index
    %78 = vector.load %arg5[%c0_34, %c0_35] : memref<32x32xf32, #tpu.memory_space<vmem>>, vector<32x32xf32>
    %cst_36 = arith.constant dense<0.000000e+00> : vector<16x32xf32>
    %79 = tpu.matmul %77, %78, %cst_36 {dimension_numbers = #tpu.dot_dimension_numbers<[1], [0], [0], [1], [0, 0, 1, 1], [], []>} : vector<16x32xf32>, vector<32x32xf32>, vector<16x32xf32> -> vector<16x32xf32>
    %80 = vector.shape_cast %79 : vector<16x32xf32> to vector<2x8x32xf32>
    %c0_37 = arith.constant 0 : index
    %c0_38 = arith.constant 0 : index
    %c0_39 = arith.constant 0 : index
    %81 = vector.load %arg10[%c0_37, %c0_38, %c0_39] : memref<2x8x32xf32, #tpu.memory_space<vmem>>, vector<2x8x32xf32>
    tpu.vector_store %arg10[%c0_37, %c0_38, %c0_39], %80 {strides = array<i32>} : memref<2x8x32xf32, #tpu.memory_space<vmem>>, vector<2x8x32xf32>,
    return
  }
  func.func @transform_0(%arg0: i32) -> (i32, i32, i32) {
    %c0_i32 = arith.constant 0 : i32
    %c0_i32_0 = arith.constant 0 : i32
    %c0_i32_1 = arith.constant 0 : i32
    return %arg0, %c0_i32, %c0_i32_0 : i32, i32, i32
  }
  func.func @transform_1(%arg0: i32) -> (i32, i32) {
    %c0_i32 = arith.constant 0 : i32
    %c0_i32_0 = arith.constant 0 : i32
    %c0_i32_1 = arith.constant 0 : i32
    return %c0_i32, %c0_i32_0 : i32, i32
  }
  func.func @transform_2(%arg0: i32) -> (i32, i32) {
    %c0_i32 = arith.constant 0 : i32
    %c0_i32_0 = arith.constant 0 : i32
    %c0_i32_1 = arith.constant 0 : i32
    return %c0_i32, %c0_i32_0 : i32, i32
  }
  func.func @transform_3(%arg0: i32) -> (i32, i32) {
    %c0_i32 = arith.constant 0 : i32
    %c0_i32_0 = arith.constant 0 : i32
    %c0_i32_1 = arith.constant 0 : i32
    return %c0_i32, %c0_i32_0 : i32, i32
  }
  func.func @transform_4(%arg0: i32) -> (i32, i32) {
    %c0_i32 = arith.constant 0 : i32
    %c0_i32_0 = arith.constant 0 : i32
    %c0_i32_1 = arith.constant 0 : i32
    return %c0_i32, %c0_i32_0 : i32, i32
  }
  func.func @transform_5(%arg0: i32) -> (i32, i32) {
    %c0_i32 = arith.constant 0 : i32
    %c0_i32_0 = arith.constant 0 : i32
    %c0_i32_1 = arith.constant 0 : i32
    return %c0_i32, %c0_i32_0 : i32, i32
  }
  func.func @transform_6(%arg0: i32) -> (i32, i32) {
    %c0_i32 = arith.constant 0 : i32
    %c0_i32_0 = arith.constant 0 : i32
    %c0_i32_1 = arith.constant 0 : i32
    return %c0_i32, %c0_i32_0 : i32, i32
  }
  func.func @transform_7(%arg0: i32) -> (i32, i32) {
    %c0_i32 = arith.constant 0 : i32
    %c0_i32_0 = arith.constant 0 : i32
    %c0_i32_1 = arith.constant 0 : i32
    return %c0_i32, %c0_i32_0 : i32, i32
  }
  func.func @transform_8(%arg0: i32) -> (i32, i32) {
    %c0_i32 = arith.constant 0 : i32
    %c0_i32_0 = arith.constant 0 : i32
    %c0_i32_1 = arith.constant 0 : i32
    return %c0_i32, %c0_i32_0 : i32, i32
  }
  func.func @transform_9(%arg0: i32) -> (i32, i32, i32) {
    %c0_i32 = arith.constant 0 : i32
    %c0_i32_0 = arith.constant 0 : i32
    %c0_i32_1 = arith.constant 0 : i32
    return %arg0, %c0_i32, %c0_i32_0 : i32, i32, i32
  }
}

</mosaic_0001>

<llo_original>
// kernel: tpu_custom_call.1
$region0: #{tpu_custom_call.1}
  #allocation0 [shape = 'u32[]', space=smem, size = 0x4, offset = 0x4, fixed_abs, tag = 'smem constant byte address 0x4 - core index']
  #allocation1 [shape = 'u32[144,128]{1,0:T(1,128)}', space=vmem, size = 0x12000, scoped, tag = 'internal scratch']
  %s0 = inlined_call_operand.hbm [shape: f32[2,8,32], index: 0, kind: input, shape index: {}]
  %s1 = inlined_call_operand.hbm [shape: f32[32,32], index: 1, kind: input, shape index: {}]
  %s2 = inlined_call_operand.hbm [shape: f32[32,32], index: 2, kind: input, shape index: {}]
  %s3 = inlined_call_operand.hbm [shape: f32[32,32], index: 3, kind: input, shape index: {}]
  %s4 = inlined_call_operand.hbm [shape: f32[32,32], index: 4, kind: input, shape index: {}]
  %s5 = inlined_call_operand.vmem [shape: f32[1,32], index: 5, kind: input, shape index: {}]
  %s6 = inlined_call_operand.vmem [shape: f32[1,32], index: 6, kind: input, shape index: {}]
  %s7 = inlined_call_operand.vmem [shape: f32[1,32], index: 7, kind: input, shape index: {}]
  %s8 = inlined_call_operand.vmem [shape: f32[1,32], index: 8, kind: input, shape index: {}]
  %s9 = inlined_call_operand.hbm [shape: f32[2,8,32], index: 9, kind: output, shape index: {}]
  %s10 = sld [smem:[#allocation0]]
  $region66: #{tpu_custom_call.1} parent=0
    _
  %s12 = ssub.s32 1, %s10
  %s13 = scalar_select 0, %s12, %s10
  $region1: #{tpu_custom_call.1} parent=0
    #allocation2 [shape = 'u8[8192]{0}', space=vmem, size = 0x2000, scoped, tag = 'input window, operand 0, single buffered']
    #allocation3 [shape = 's32[1]{0}', space=sflag, size = 0x4, scoped, tag = 'scoped memory for tpu_custom_call.1']
    #allocation4 [shape = 's32[1]{0}', space=sflag, size = 0x4, scoped, tag = 'scoped memory for tpu_custom_call.1']
    #allocation5 [shape = 'u8[16384]{0}', space=vmem, size = 0x4000, scoped, tag = 'input window, operand 1, single buffered']
    #allocation6 [shape = 's32[1]{0}', space=sflag, size = 0x4, scoped, tag = 'scoped memory for tpu_custom_call.1']
    #allocation7 [shape = 'u8[16384]{0}', space=vmem, size = 0x4000, scoped, tag = 'input window, operand 2, single buffered']
    #allocation8 [shape = 'u8[16384]{0}', space=vmem, size = 0x4000, scoped, tag = 'input window, operand 3, single buffered']
    #allocation9 [shape = 's32[1]{0}', space=sflag, size = 0x4, scoped, tag = 'scoped memory for tpu_custom_call.1']
    #allocation10 [shape = 'u8[16384]{0}', space=vmem, size = 0x4000, scoped, tag = 'input window, operand 4, single buffered']
    #allocation11 [shape = 'u8[8192]{0}', space=vmem, size = 0x2000, scoped, tag = 'output window, operand 0, single buffered']
    %14 = vsyncpa [#allocation3], 0
    %15 = vsyncpa [#allocation6], 0
    %16 = vsyncpa [#allocation9], 0
    %17 = vsyncpa [#allocation4], 0
    // Predicated region
    $region2: #{tpu_custom_call.1} parent=1 // pred_check
      _
    $region3: #{tpu_custom_call.1} parent=1 // pred_check_branch
      %19 = sbr.rel (0) target = $region5
    $region4: #{tpu_custom_call.1} parent=1 // pred_region
      %s21 = ssub.s32 256, 256
      %22 = vsyncadd [#allocation3], %s21
      %s23 = sshll.u32 [#allocation2], 4
      %s24 = int_to_ptr.vmem [resolvable:$true] %s23
      %29 = dma.hbm_to_vmem [thread:$0]  %s0, 256, %s24, [#allocation3], 128, 128, 8
    $region5: #{tpu_custom_call.1} parent=1 // pred_fallthru
      _
    // Predicated region
    $region6: #{tpu_custom_call.1} parent=1 // pred_check
      _
    $region7: #{tpu_custom_call.1} parent=1 // pred_check_branch
      %31 = sbr.rel (0) target = $region9
    $region8: #{tpu_custom_call.1} parent=1 // pred_region
      %s33 = ssub.s32 512, 512
      %34 = vsyncadd [#allocation6], %s33
      %s35 = sshll.u32 [#allocation5], 4
      %s36 = int_to_ptr.vmem [resolvable:$true] %s35
      %41 = dma.hbm_to_vmem [thread:$0]  %s1, 512, %s36, [#allocation6], 128, 128, 8
    $region9: #{tpu_custom_call.1} parent=1 // pred_fallthru
      _
    // Predicated region
    $region10: #{tpu_custom_call.1} parent=1 // pred_check
      _
    $region11: #{tpu_custom_call.1} parent=1 // pred_check_branch
      %43 = sbr.rel (0) target = $region13
    $region12: #{tpu_custom_call.1} parent=1 // pred_region
      %s45 = ssub.s32 512, 512
      %46 = vsyncadd [#allocation6], %s45
      %s47 = sshll.u32 [#allocation7], 4
      %s48 = int_to_ptr.vmem [resolvable:$true] %s47
      %53 = dma.hbm_to_vmem [thread:$0]  %s2, 512, %s48, [#allocation6], 128, 128, 8
    $region13: #{tpu_custom_call.1} parent=1 // pred_fallthru
      _
    // Predicated region
    $region14: #{tpu_custom_call.1} parent=1 // pred_check
      _
    $region15: #{tpu_custom_call.1} parent=1 // pred_check_branch
      %55 = sbr.rel (0) target = $region17
    $region16: #{tpu_custom_call.1} parent=1 // pred_region
      %s57 = ssub.s32 512, 512
      %58 = vsyncadd [#allocation9], %s57
      %s59 = sshll.u32 [#allocation8], 4
      %s60 = int_to_ptr.vmem [resolvable:$true] %s59
      %65 = dma.hbm_to_vmem [thread:$0]  %s3, 512, %s60, [#allocation9], 128, 128, 8
    $region17: #{tpu_custom_call.1} parent=1 // pred_fallthru
      _
    // Predicated region
    $region18: #{tpu_custom_call.1} parent=1 // pred_check
      _
    $region19: #{tpu_custom_call.1} parent=1 // pred_check_branch
      %67 = sbr.rel (0) target = $region21
    $region20: #{tpu_custom_call.1} parent=1 // pred_region
      %s69 = ssub.s32 512, 512
      %70 = vsyncadd [#allocation9], %s69
      %s71 = sshll.u32 [#allocation10], 4
      %s72 = int_to_ptr.vmem [resolvable:$true] %s71
      %77 = dma.hbm_to_vmem [thread:$0]  %s4, 512, %s72, [#allocation9], 128, 128, 8
    $region21: #{tpu_custom_call.1} parent=1 // pred_fallthru
      _
    // Predicated region
    $region22: #{tpu_custom_call.1} parent=1 // pred_check
      _
    $region23: #{tpu_custom_call.1} parent=1 // pred_check_branch
      %79 = sbr.rel (0) target = $region25
    $region24: #{tpu_custom_call.1} parent=1 // pred_region
      _
    $region25: #{tpu_custom_call.1} parent=1 // pred_fallthru
      _
    // Predicated region
    $region26: #{tpu_custom_call.1} parent=1 // pred_check
      _
    $region27: #{tpu_custom_call.1} parent=1 // pred_check_branch
      %81 = sbr.rel (0) target = $region29
    $region28: #{tpu_custom_call.1} parent=1 // pred_region
      _
    $region29: #{tpu_custom_call.1} parent=1 // pred_fallthru
      _
    // Predicated region
    $region30: #{tpu_custom_call.1} parent=1 // pred_check
      _
    $region31: #{tpu_custom_call.1} parent=1 // pred_check_branch
      %83 = sbr.rel (0) target = $region33
    $region32: #{tpu_custom_call.1} parent=1 // pred_region
      _
    $region33: #{tpu_custom_call.1} parent=1 // pred_fallthru
      _
    // Predicated region
    $region34: #{tpu_custom_call.1} parent=1 // pred_check
      _
    $region35: #{tpu_custom_call.1} parent=1 // pred_check_branch
      %85 = sbr.rel (0) target = $region37
    $region36: #{tpu_custom_call.1} parent=1 // pred_region
      _
    $region37: #{tpu_custom_call.1} parent=1 // pred_fallthru
      _
    // Predicated region
    $region38: #{tpu_custom_call.1} parent=1 // pred_check
      _
    $region39: #{tpu_custom_call.1} parent=1 // pred_check_branch
      %87 = sbr.rel (0) target = $region41
    $region40: #{tpu_custom_call.1} parent=1 // pred_region
      %88 = dma.done [#allocation3], 256
    $region41: #{tpu_custom_call.1} parent=1 // pred_fallthru
      _
    // Predicated region
    $region42: #{tpu_custom_call.1} parent=1 // pred_check
      _
    $region43: #{tpu_custom_call.1} parent=1 // pred_check_branch
      %90 = sbr.rel (0) target = $region45
    $region44: #{tpu_custom_call.1} parent=1 // pred_region
      %91 = dma.done [#allocation6], 512
    $region45: #{tpu_custom_call.1} parent=1 // pred_fallthru
      _
    // Predicated region
    $region46: #{tpu_custom_call.1} parent=1 // pred_check
      _
    $region47: #{tpu_custom_call.1} parent=1 // pred_check_branch
      %93 = sbr.rel (0) target = $region49
    $region48: #{tpu_custom_call.1} parent=1 // pred_region
      %94 = dma.done [#allocation6], 512
    $region49: #{tpu_custom_call.1} parent=1 // pred_fallthru
      _
    // Predicated region
    $region50: #{tpu_custom_call.1} parent=1 // pred_check
      _
    $region51: #{tpu_custom_call.1} parent=1 // pred_check_branch
      %96 = sbr.rel (0) target = $region53
    $region52: #{tpu_custom_call.1} parent=1 // pred_region
      %97 = dma.done [#allocation9], 512
    $region53: #{tpu_custom_call.1} parent=1 // pred_fallthru
      _
    // Predicated region
    $region54: #{tpu_custom_call.1} parent=1 // pred_check
      _
    $region55: #{tpu_custom_call.1} parent=1 // pred_check_branch
      %99 = sbr.rel (0) target = $region57
    $region56: #{tpu_custom_call.1} parent=1 // pred_region
      %100 = dma.done [#allocation9], 512
    $region57: #{tpu_custom_call.1} parent=1 // pred_fallthru
      _
    %v101 = vld [vmem:[#allocation2] sm:$0xff]
    %v102 = vld [vmem:[#allocation2 + $0x8] sm:$0xff]
    %v103 = vld [vmem:[%s5] sm:$0x1]
    %v104 = vld [vmem:[%s6] sm:$0x1]
    %vm105 = vcmask 261120
    %v106 = vsel %vm105, %v101, 0.0
    %107 = vadd.xlane.f32.xlu0 %v106
    %v108 = vpop.xlane.xlu0 %107
    %v109 = vsel %vm105, %v102, 0.0
    %110 = vadd.xlane.f32.xlu0 %v109
    %v111 = vpop.xlane.xlu0 %110
    %v112 = vrcp.pop 32.0
    %v113 = vmul.f32 %v108, %v112
    %v114 = vmul.f32 %v111, %v112
    %v115 = vsub.f32 %v101, %v113
    %v116 = vsub.f32 %v102, %v114
    %v117 = vmul.f32 %v115, %v115
    %v118 = vmul.f32 %v116, %v116
    %v119 = vsel %vm105, %v117, 0.0
    %120 = vadd.xlane.f32.xlu0 %v119
    %v121 = vpop.xlane.xlu0 %120
    %v122 = vsel %vm105, %v118, 0.0
    %123 = vadd.xlane.f32.xlu0 %v122
    %v124 = vpop.xlane.xlu0 %123
    %v125 = vmul.f32 %v121, %v112
    %v126 = vmul.f32 %v124, %v112
    %v127 = vadd.f32 %v125, 1e-05
    %v128 = vadd.f32 %v126, 1e-05
    %v129 = vrsqrt.pop %v127
    %v130 = vrsqrt.pop %v128
    %v131 = vmul.f32 %v115, %v129
    %v132 = vmul.f32 %v116, %v130
    %v134 = vlaneseq
    %v135 = vshrl.u32 %v134, 7
    %v136 = vsub.s32 0, %v135
    %v137 = vrot.slane %v103, %v136
    %v139 = vmul.f32 %v131, %v137
    %v140 = vmul.f32 %v132, %v137
    %v142 = vlaneseq
    %v143 = vshrl.u32 %v142, 7
    %v144 = vsub.s32 0, %v143
    %v145 = vrot.slane %v104, %v144
    %v147 = vadd.f32 %v139, %v145
    %v148 = vadd.f32 %v140, %v145
    %v149 = vld [vmem:[#allocation5] sm:$0xff]
    %v150 = vld [vmem:[#allocation5 + $0x8] sm:$0xff]
    %v151 = vld [vmem:[#allocation5 + $0x10] sm:$0xff]
    %v152 = vld [vmem:[#allocation5 + $0x18] sm:$0xff]
    %v154 = vsel %vm105, %v147, 0
    %v157 = vsel %vm105, %v148, 0
    %159 = vmatprep.subr.mxu0 0.0
    %160 = vmatpush1.msra.mxu0 %v149
    %161 = vmatprep.subr.mxu0 0.0
    %162 = vmatpush1.msra.mxu0 %v150
    %163 = vmatprep.subr.mxu0 0.0
    %164 = vmatpush1.msra.mxu0 %v151
    %165 = vmatprep.subr.mxu0 0.0
    %166 = vmatpush1.msra.mxu0 %v152
    %167 = vmatprep.subr.mxu0 0.0
    %168 = vmatpush1.msra.mxu0 0.0
    %169 = vmatprep.subr.mxu0 0.0
    %170 = vmatpush1.msra.mxu0 0.0
    %171 = vmatprep.subr.mxu0 0.0
    %172 = vmatpush1.msra.mxu0 0.0
    %173 = vmatprep.subr.mxu0 0.0
    %174 = vmatpush1.msra.mxu0 0.0
    %175 = vmatprep.subr.mxu0 0.0
    %176 = vmatpush1.msra.mxu0 0.0
    %177 = vmatprep.subr.mxu0 0.0
    %178 = vmatpush1.msra.mxu0 0.0
    %179 = vmatprep.subr.mxu0 0.0
    %180 = vmatpush1.msra.mxu0 0.0
    %181 = vmatprep.subr.mxu0 0.0
    %182 = vmatpush1.msra.mxu0 0.0
    %183 = vmatprep.subr.mxu0 0.0
    %184 = vmatpush1.msra.mxu0 0.0
    %185 = vmatprep.subr.mxu0 0.0
    %186 = vmatpush1.msra.mxu0 0.0
    %187 = vmatprep.subr.mxu0 0.0
    %188 = vmatpush1.msra.mxu0 0.0
    %189 = vmatprep.subr.mxu0 0.0
    %190 = vmatpush1.msra.mxu0 0.0
    %191 = vmatprep.subr.mxu0 0.0
    %192 = vmatpush1.msra.mxu0 0.0
    %193 = vmatprep.subr.mxu0 0.0
    %194 = vmatpush1.msra.mxu0 0.0
    %195 = vmatprep.subr.mxu0 0.0
    %196 = vmatpush1.msra.mxu0 0.0
    %197 = vmatprep.subr.mxu0 0.0
    %198 = vmatpush1.msra.mxu0 0.0
    %199 = vmatprep.subr.mxu0 0.0
    %200 = vmatpush1.msra.mxu0 0.0
    %201 = vmatprep.subr.mxu0 0.0
    %202 = vmatpush1.msra.mxu0 0.0
    %203 = vmatprep.subr.mxu0 0.0
    %204 = vmatpush1.msra.mxu0 0.0
    %205 = vmatprep.subr.mxu0 0.0
    %206 = vmatpush1.msra.mxu0 0.0
    %207 = vmatprep.subr.mxu0 0.0
    %208 = vmatpush1.msra.mxu0 0.0
    %209 = vmatprep.subr.mxu0 0.0
    %210 = vmatpush1.msra.mxu0 0.0
    %211 = vmatprep.subr.mxu0 0.0
    %212 = vmatpush1.msra.mxu0 0.0
    %213 = vmatprep.subr.mxu0 0.0
    %214 = vmatpush1.msra.mxu0 0.0
    %215 = vmatprep.subr.mxu0 0.0
    %216 = vmatpush1.msra.mxu0 0.0
    %217 = vmatprep.subr.mxu0 0.0
    %218 = vmatpush1.msra.mxu0 0.0
    %219 = vmatprep.subr.mxu0 0.0
    %220 = vmatpush1.msra.mxu0 0.0
    %221 = vmatprep.subr.mxu0 0.0
    %222 = vmatpush1.msra.mxu0 0.0
    %223 = vmatprep.mubr.f32.mxu0 0.0
    %224 = vmatmul.mubr.f32.gmra.mrb[0].mxu0 %v154
    %v225 = vpop.f32.mrb[0].mxu0
    %v226 = vadd.f32 0.0, %v225
    %v227 = vpop.f32.mrb[0].mxu0
    %228 = vmatprep.mubr.f32.mxu0 0.0
    %229 = vmatmul.mubr.f32.gmra.mrb[0].mxu0 %v157
    %v230 = vpop.f32.mrb[0].mxu0
    %v231 = vadd.f32 0.0, %v230
    %v232 = vpop.f32.mrb[0].mxu0
    %233 = vdwg.mxu0
    %v234 = vld [vmem:[#allocation7] sm:$0xff]
    %v235 = vld [vmem:[#allocation7 + $0x8] sm:$0xff]
    %v236 = vld [vmem:[#allocation7 + $0x10] sm:$0xff]
    %v237 = vld [vmem:[#allocation7 + $0x18] sm:$0xff]
    %238 = vmatprep.subr.mxu0 0.0
    %239 = vmatpush1.msra.mxu0 %v234
    %240 = vmatprep.subr.mxu0 0.0
    %241 = vmatpush1.msra.mxu0 %v235
    %242 = vmatprep.subr.mxu0 0.0
    %243 = vmatpush1.msra.mxu0 %v236
    %244 = vmatprep.subr.mxu0 0.0
    %245 = vmatpush1.msra.mxu0 %v237
    %246 = vmatprep.subr.mxu0 0.0
    %247 = vmatpush1.msra.mxu0 0.0
    %248 = vmatprep.subr.mxu0 0.0
    %249 = vmatpush1.msra.mxu0 0.0
    %250 = vmatprep.subr.mxu0 0.0
    %251 = vmatpush1.msra.mxu0 0.0
    %252 = vmatprep.subr.mxu0 0.0
    %253 = vmatpush1.msra.mxu0 0.0
    %254 = vmatprep.subr.mxu0 0.0
    %255 = vmatpush1.msra.mxu0 0.0
    %256 = vmatprep.subr.mxu0 0.0
    %257 = vmatpush1.msra.mxu0 0.0
    %258 = vmatprep.subr.mxu0 0.0
    %259 = vmatpush1.msra.mxu0 0.0
    %260 = vmatprep.subr.mxu0 0.0
    %261 = vmatpush1.msra.mxu0 0.0
    %262 = vmatprep.subr.mxu0 0.0
    %263 = vmatpush1.msra.mxu0 0.0
    %264 = vmatprep.subr.mxu0 0.0
    %265 = vmatpush1.msra.mxu0 0.0
    %266 = vmatprep.subr.mxu0 0.0
    %267 = vmatpush1.msra.mxu0 0.0
    %268 = vmatprep.subr.mxu0 0.0
    %269 = vmatpush1.msra.mxu0 0.0
    %270 = vmatprep.subr.mxu0 0.0
    %271 = vmatpush1.msra.mxu0 0.0
    %272 = vmatprep.subr.mxu0 0.0
    %273 = vmatpush1.msra.mxu0 0.0
    %274 = vmatprep.subr.mxu0 0.0
    %275 = vmatpush1.msra.mxu0 0.0
    %276 = vmatprep.subr.mxu0 0.0
    %277 = vmatpush1.msra.mxu0 0.0
    %278 = vmatprep.subr.mxu0 0.0
    %279 = vmatpush1.msra.mxu0 0.0
    %280 = vmatprep.subr.mxu0 0.0
    %281 = vmatpush1.msra.mxu0 0.0
    %282 = vmatprep.subr.mxu0 0.0
    %283 = vmatpush1.msra.mxu0 0.0
    %284 = vmatprep.subr.mxu0 0.0
    %285 = vmatpush1.msra.mxu0 0.0
    %286 = vmatprep.subr.mxu0 0.0
    %287 = vmatpush1.msra.mxu0 0.0
    %288 = vmatprep.subr.mxu0 0.0
    %289 = vmatpush1.msra.mxu0 0.0
    %290 = vmatprep.subr.mxu0 0.0
    %291 = vmatpush1.msra.mxu0 0.0
    %292 = vmatprep.subr.mxu0 0.0
    %293 = vmatpush1.msra.mxu0 0.0
    %294 = vmatprep.subr.mxu0 0.0
    %295 = vmatpush1.msra.mxu0 0.0
    %296 = vmatprep.subr.mxu0 0.0
    %297 = vmatpush1.msra.mxu0 0.0
    %298 = vmatprep.subr.mxu0 0.0
    %299 = vmatpush1.msra.mxu0 0.0
    %300 = vmatprep.subr.mxu0 0.0
    %301 = vmatpush1.msra.mxu0 0.0
    %302 = vmatprep.mubr.f32.mxu0 0.0
    %303 = vmatmul.mubr.f32.gmra.mrb[0].mxu0 %v154
    %v304 = vpop.f32.mrb[0].mxu0
    %v305 = vadd.f32 0.0, %v304
    %v306 = vpop.f32.mrb[0].mxu0
    %307 = vmatprep.mubr.f32.mxu0 0.0
    %308 = vmatmul.mubr.f32.gmra.mrb[0].mxu0 %v157
    %v309 = vpop.f32.mrb[0].mxu0
    %v310 = vadd.f32 0.0, %v309
    %v311 = vpop.f32.mrb[0].mxu0
    %312 = vdwg.mxu0
    %v313 = vld [vmem:[#allocation8] sm:$0xff]
    %v314 = vld [vmem:[#allocation8 + $0x8] sm:$0xff]
    %v315 = vld [vmem:[#allocation8 + $0x10] sm:$0xff]
    %v316 = vld [vmem:[#allocation8 + $0x18] sm:$0xff]
    %317 = vmatprep.subr.mxu0 0.0
    %318 = vmatpush1.msra.mxu0 %v313
    %319 = vmatprep.subr.mxu0 0.0
    %320 = vmatpush1.msra.mxu0 %v314
    %321 = vmatprep.subr.mxu0 0.0
    %322 = vmatpush1.msra.mxu0 %v315
    %323 = vmatprep.subr.mxu0 0.0
    %324 = vmatpush1.msra.mxu0 %v316
    %325 = vmatprep.subr.mxu0 0.0
    %326 = vmatpush1.msra.mxu0 0.0
    %327 = vmatprep.subr.mxu0 0.0
    %328 = vmatpush1.msra.mxu0 0.0
    %329 = vmatprep.subr.mxu0 0.0
    %330 = vmatpush1.msra.mxu0 0.0
    %331 = vmatprep.subr.mxu0 0.0
    %332 = vmatpush1.msra.mxu0 0.0
    %333 = vmatprep.subr.mxu0 0.0
    %334 = vmatpush1.msra.mxu0 0.0
    %335 = vmatprep.subr.mxu0 0.0
    %336 = vmatpush1.msra.mxu0 0.0
    %337 = vmatprep.subr.mxu0 0.0
    %338 = vmatpush1.msra.mxu0 0.0
    %339 = vmatprep.subr.mxu0 0.0
    %340 = vmatpush1.msra.mxu0 0.0
    %341 = vmatprep.subr.mxu0 0.0
    %342 = vmatpush1.msra.mxu0 0.0
    %343 = vmatprep.subr.mxu0 0.0
    %344 = vmatpush1.msra.mxu0 0.0
    %345 = vmatprep.subr.mxu0 0.0
    %346 = vmatpush1.msra.mxu0 0.0
    %347 = vmatprep.subr.mxu0 0.0
    %348 = vmatpush1.msra.mxu0 0.0
    %349 = vmatprep.subr.mxu0 0.0
    %350 = vmatpush1.msra.mxu0 0.0
    %351 = vmatprep.subr.mxu0 0.0
    %352 = vmatpush1.msra.mxu0 0.0
    %353 = vmatprep.subr.mxu0 0.0
    %354 = vmatpush1.msra.mxu0 0.0
    %355 = vmatprep.subr.mxu0 0.0
    %356 = vmatpush1.msra.mxu0 0.0
    %357 = vmatprep.subr.mxu0 0.0
    %358 = vmatpush1.msra.mxu0 0.0
    %359 = vmatprep.subr.mxu0 0.0
    %360 = vmatpush1.msra.mxu0 0.0
    %361 = vmatprep.subr.mxu0 0.0
    %362 = vmatpush1.msra.mxu0 0.0
    %363 = vmatprep.subr.mxu0 0.0
    %364 = vmatpush1.msra.mxu0 0.0
    %365 = vmatprep.subr.mxu0 0.0
    %366 = vmatpush1.msra.mxu0 0.0
    %367 = vmatprep.subr.mxu0 0.0
    %368 = vmatpush1.msra.mxu0 0.0
    %369 = vmatprep.subr.mxu0 0.0
    %370 = vmatpush1.msra.mxu0 0.0
    %371 = vmatprep.subr.mxu0 0.0
    %372 = vmatpush1.msra.mxu0 0.0
    %373 = vmatprep.subr.mxu0 0.0
    %374 = vmatpush1.msra.mxu0 0.0
    %375 = vmatprep.subr.mxu0 0.0
    %376 = vmatpush1.msra.mxu0 0.0
    %377 = vmatprep.subr.mxu0 0.0
    %378 = vmatpush1.msra.mxu0 0.0
    %379 = vmatprep.subr.mxu0 0.0
    %380 = vmatpush1.msra.mxu0 0.0
    %381 = vmatprep.mubr.f32.mxu0 0.0
    %382 = vmatmul.mubr.f32.gmra.mrb[0].mxu0 %v154
    %v383 = vpop.f32.mrb[0].mxu0
    %v384 = vadd.f32 0.0, %v383
    %v385 = vpop.f32.mrb[0].mxu0
    %386 = vmatprep.mubr.f32.mxu0 0.0
    %387 = vmatmul.mubr.f32.gmra.mrb[0].mxu0 %v157
    %v388 = vpop.f32.mrb[0].mxu0
    %v389 = vadd.f32 0.0, %v388
    %v390 = vpop.f32.mrb[0].mxu0
    %391 = vdwg.mxu0
    %v392 = vsel %vm105, %v226, -inf
    %393 = vmax.xlane.f32.xlu0 %v392
    %v394 = vpop.xlane.xlu0 %393
    %v395 = vsel %vm105, %v231, -inf
    %396 = vmax.xlane.f32.xlu0 %v395
    %v397 = vpop.xlane.xlu0 %396
    %v398 = vsub.f32 %v226, %v394
    %v399 = vsub.f32 %v231, %v397
    %v400 = vmul.f32 %v398, 1.442695
    %v401 = vpow.pop %v400
    %v402 = vmul.f32 %v399, 1.442695
    %v403 = vpow.pop %v402
    %v404 = vsel %vm105, %v401, 0.0
    %405 = vadd.xlane.f32.xlu0 %v404
    %v406 = vpop.xlane.xlu0 %405
    %v407 = vsel %vm105, %v403, 0.0
    %408 = vadd.xlane.f32.xlu0 %v407
    %v409 = vpop.xlane.xlu0 %408
    %v410 = vrcp.pop %v406
    %v411 = vrcp.pop %v409
    %v412 = vmul.f32 %v401, %v410
    %v413 = vmul.f32 %v403, %v411
    %v414 = vsel %vm105, %v305, -inf
    %v415 = vrot.slane %v414, 4
    %v416 = vmax.f32 %v414, %v415
    %v417 = vrot.slane %v416, 2
    %v418 = vmax.f32 %v416, %v417
    %v419 = vrot.slane %v418, 1
    %v420 = vmax.f32 %v418, %v419
    %v421 = vsel %vm105, %v310, -inf
    %v422 = vrot.slane %v421, 4
    %v423 = vmax.f32 %v421, %v422
    %v424 = vrot.slane %v423, 2
    %v425 = vmax.f32 %v423, %v424
    %v426 = vrot.slane %v425, 1
    %v427 = vmax.f32 %v425, %v426
    %v428 = vsub.f32 %v305, %v420
    %v429 = vsub.f32 %v310, %v427
    %v430 = vmul.f32 %v428, 1.442695
    %v431 = vpow.pop %v430
    %v432 = vmul.f32 %v429, 1.442695
    %v433 = vpow.pop %v432
    %v434 = vsel %vm105, %v431, 0.0
    %v435 = vrot.slane %v434, 4
    %v436 = vadd.f32 %v434, %v435
    %v437 = vrot.slane %v436, 2
    %v438 = vadd.f32 %v436, %v437
    %v439 = vrot.slane %v438, 1
    %v440 = vadd.f32 %v438, %v439
    %v441 = vsel %vm105, %v433, 0.0
    %v442 = vrot.slane %v441, 4
    %v443 = vadd.f32 %v441, %v442
    %v444 = vrot.slane %v443, 2
    %v445 = vadd.f32 %v443, %v444
    %v446 = vrot.slane %v445, 1
    %v447 = vadd.f32 %v445, %v446
    %v448 = vrcp.pop %v440
    %v449 = vrcp.pop %v447
    %v450 = vmul.f32 %v431, %v448
    %v451 = vmul.f32 %v433, %v449
    %452 = vxpose.xlu0.b32.start [1/16] %v450, 128
    %453 = vxpose.xlu0.b32.cont [2/16] 0.0, 128
    %454 = vxpose.xlu0.b32.cont [3/16] 0.0, 128
    %455 = vxpose.xlu0.b32.cont [4/16] 0.0, 128
    %456 = vxpose.xlu0.b32.cont [5/16] 0.0, 128
    %457 = vxpose.xlu0.b32.cont [6/16] 0.0, 128
    %458 = vxpose.xlu0.b32.cont [7/16] 0.0, 128
    %459 = vxpose.xlu0.b32.cont [8/16] 0.0, 128
    %460 = vxpose.xlu0.b32.cont [9/16] 0.0, 128
    %461 = vxpose.xlu0.b32.cont [10/16] 0.0, 128
    %462 = vxpose.xlu0.b32.cont [11/16] 0.0, 128
    %463 = vxpose.xlu0.b32.cont [12/16] 0.0, 128
    %464 = vxpose.xlu0.b32.cont [13/16] 0.0, 128
    %465 = vxpose.xlu0.b32.cont [14/16] 0.0, 128
    %466 = vxpose.xlu0.b32.cont [15/16] 0.0, 128
    %467 = vxpose.xlu0.b32.end [16/16] 0.0, 128
    %v468 = vpop.trf.xlu0
    %v469 = vpop.trf.xlu0
    %v470 = vpop.trf.xlu0
    %v471 = vpop.trf.xlu0
    %v472 = vpop.trf.xlu0
    %v473 = vpop.trf.xlu0
    %v474 = vpop.trf.xlu0
    %v475 = vpop.trf.xlu0
    %v476 = vpop.trf.xlu0
    %v477 = vpop.trf.xlu0
    %v478 = vpop.trf.xlu0
    %v479 = vpop.trf.xlu0
    %v480 = vpop.trf.xlu0
    %v481 = vpop.trf.xlu0
    %v482 = vpop.trf.xlu0
    %v483 = vpop.trf.xlu0
    %vm484 = vcmask 64512
    %v486 = vsel %vm484, %v468, 0
    %v489 = vsel %vm484, %v469, 0
    %v492 = vsel %vm484, %v470, 0
    %v495 = vsel %vm484, %v471, 0
    %497 = vmatprep.subr.mxu0 0.0
    %498 = vmatpush1.msra.mxu0 %v384
    %499 = vmatprep.subr.mxu0 0.0
    %500 = vmatpush1.msra.mxu0 0.0
    %501 = vmatprep.subr.mxu0 0.0
    %502 = vmatpush1.msra.mxu0 0.0
    %503 = vmatprep.subr.mxu0 0.0
    %504 = vmatpush1.msra.mxu0 0.0
    %505 = vmatprep.subr.mxu0 0.0
    %506 = vmatpush1.msra.mxu0 0.0
    %507 = vmatprep.subr.mxu0 0.0
    %508 = vmatpush1.msra.mxu0 0.0
    %509 = vmatprep.subr.mxu0 0.0
    %510 = vmatpush1.msra.mxu0 0.0
    %511 = vmatprep.subr.mxu0 0.0
    %512 = vmatpush1.msra.mxu0 0.0
    %513 = vmatprep.subr.mxu0 0.0
    %514 = vmatpush1.msra.mxu0 0.0
    %515 = vmatprep.subr.mxu0 0.0
    %516 = vmatpush1.msra.mxu0 0.0
    %517 = vmatprep.subr.mxu0 0.0
    %518 = vmatpush1.msra.mxu0 0.0
    %519 = vmatprep.subr.mxu0 0.0
    %520 = vmatpush1.msra.mxu0 0.0
    %521 = vmatprep.subr.mxu0 0.0
    %522 = vmatpush1.msra.mxu0 0.0
    %523 = vmatprep.subr.mxu0 0.0
    %524 = vmatpush1.msra.mxu0 0.0
    %525 = vmatprep.subr.mxu0 0.0
    %526 = vmatpush1.msra.mxu0 0.0
    %527 = vmatprep.subr.mxu0 0.0
    %528 = vmatpush1.msra.mxu0 0.0
    %529 = vmatprep.subr.mxu0 0.0
    %530 = vmatpush1.msra.mxu0 0.0
    %531 = vmatprep.subr.mxu0 0.0
    %532 = vmatpush1.msra.mxu0 0.0
    %533 = vmatprep.subr.mxu0 0.0
    %534 = vmatpush1.msra.mxu0 0.0
    %535 = vmatprep.subr.mxu0 0.0
    %536 = vmatpush1.msra.mxu0 0.0
    %537 = vmatprep.subr.mxu0 0.0
    %538 = vmatpush1.msra.mxu0 0.0
    %539 = vmatprep.subr.mxu0 0.0
    %540 = vmatpush1.msra.mxu0 0.0
    %541 = vmatprep.subr.mxu0 0.0
    %542 = vmatpush1.msra.mxu0 0.0
    %543 = vmatprep.subr.mxu0 0.0
    %544 = vmatpush1.msra.mxu0 0.0
    %545 = vmatprep.subr.mxu0 0.0
    %546 = vmatpush1.msra.mxu0 0.0
    %547 = vmatprep.subr.mxu0 0.0
    %548 = vmatpush1.msra.mxu0 0.0
    %549 = vmatprep.subr.mxu0 0.0
    %550 = vmatpush1.msra.mxu0 0.0
    %551 = vmatprep.subr.mxu0 0.0
    %552 = vmatpush1.msra.mxu0 0.0
    %553 = vmatprep.subr.mxu0 0.0
    %554 = vmatpush1.msra.mxu0 0.0
    %555 = vmatprep.subr.mxu0 0.0
    %556 = vmatpush1.msra.mxu0 0.0
    %557 = vmatprep.subr.mxu0 0.0
    %558 = vmatpush1.msra.mxu0 0.0
    %559 = vmatprep.subr.mxu0 0.0
    %560 = vmatpush1.msra.mxu0 0.0
    %561 = vmatprep.mubr.f32.mxu0 0.0
    %562 = vmatmul.mubr.f32.gmra.mrb[0].mxu0 %v486
    %v563 = vpop.f32.mrb[0].mxu0
    %v564 = vadd.f32 0.0, %v563
    %v565 = vpop.f32.mrb[0].mxu0
    %566 = vmatprep.mubr.f32.mxu0 0.0
    %567 = vmatmul.mubr.f32.gmra.mrb[0].mxu0 %v489
    %v568 = vpop.f32.mrb[0].mxu0
    %v569 = vadd.f32 0.0, %v568
    %v570 = vpop.f32.mrb[0].mxu0
    %571 = vmatprep.mubr.f32.mxu0 0.0
    %572 = vmatmul.mubr.f32.gmra.mrb[0].mxu0 %v492
    %v573 = vpop.f32.mrb[0].mxu0
    %v574 = vadd.f32 0.0, %v573
    %v575 = vpop.f32.mrb[0].mxu0
    %576 = vmatprep.mubr.f32.mxu0 0.0
    %577 = vmatmul.mubr.f32.gmra.mrb[0].mxu0 %v495
    %v578 = vpop.f32.mrb[0].mxu0
    %v579 = vadd.f32 0.0, %v578
    %v580 = vpop.f32.mrb[0].mxu0
    %581 = vdwg.mxu0
    %582 = vxpose.xlu0.b32.start [1/16] %v451, 128
    %583 = vxpose.xlu0.b32.cont [2/16] 0.0, 128
    %584 = vxpose.xlu0.b32.cont [3/16] 0.0, 128
    %585 = vxpose.xlu0.b32.cont [4/16] 0.0, 128
    %586 = vxpose.xlu0.b32.cont [5/16] 0.0, 128
    %587 = vxpose.xlu0.b32.cont [6/16] 0.0, 128
    %588 = vxpose.xlu0.b32.cont [7/16] 0.0, 128
    %589 = vxpose.xlu0.b32.cont [8/16] 0.0, 128
    %590 = vxpose.xlu0.b32.cont [9/16] 0.0, 128
    %591 = vxpose.xlu0.b32.cont [10/16] 0.0, 128
    %592 = vxpose.xlu0.b32.cont [11/16] 0.0, 128
    %593 = vxpose.xlu0.b32.cont [12/16] 0.0, 128
    %594 = vxpose.xlu0.b32.cont [13/16] 0.0, 128
    %595 = vxpose.xlu0.b32.cont [14/16] 0.0, 128
    %596 = vxpose.xlu0.b32.cont [15/16] 0.0, 128
    %597 = vxpose.xlu0.b32.end [16/16] 0.0, 128
    %v598 = vpop.trf.xlu0
    %v599 = vpop.trf.xlu0
    %v600 = vpop.trf.xlu0
    %v601 = vpop.trf.xlu0
    %v602 = vpop.trf.xlu0
    %v603 = vpop.trf.xlu0
    %v604 = vpop.trf.xlu0
    %v605 = vpop.trf.xlu0
    %v606 = vpop.trf.xlu0
    %v607 = vpop.trf.xlu0
    %v608 = vpop.trf.xlu0
    %v609 = vpop.trf.xlu0
    %v610 = vpop.trf.xlu0
    %v611 = vpop.trf.xlu0
    %v612 = vpop.trf.xlu0
    %v613 = vpop.trf.xlu0
    %v615 = vsel %vm484, %v598, 0
    %v618 = vsel %vm484, %v599, 0
    %v621 = vsel %vm484, %v600, 0
    %v624 = vsel %vm484, %v601, 0
    %626 = vmatprep.subr.mxu0 0.0
    %627 = vmatpush1.msra.mxu0 %v389
    %628 = vmatprep.subr.mxu0 0.0
    %629 = vmatpush1.msra.mxu0 0.0
    %630 = vmatprep.subr.mxu0 0.0
    %631 = vmatpush1.msra.mxu0 0.0
    %632 = vmatprep.subr.mxu0 0.0
    %633 = vmatpush1.msra.mxu0 0.0
    %634 = vmatprep.subr.mxu0 0.0
    %635 = vmatpush1.msra.mxu0 0.0
    %636 = vmatprep.subr.mxu0 0.0
    %637 = vmatpush1.msra.mxu0 0.0
    %638 = vmatprep.subr.mxu0 0.0
    %639 = vmatpush1.msra.mxu0 0.0
    %640 = vmatprep.subr.mxu0 0.0
    %641 = vmatpush1.msra.mxu0 0.0
    %642 = vmatprep.subr.mxu0 0.0
    %643 = vmatpush1.msra.mxu0 0.0
    %644 = vmatprep.subr.mxu0 0.0
    %645 = vmatpush1.msra.mxu0 0.0
    %646 = vmatprep.subr.mxu0 0.0
    %647 = vmatpush1.msra.mxu0 0.0
    %648 = vmatprep.subr.mxu0 0.0
    %649 = vmatpush1.msra.mxu0 0.0
    %650 = vmatprep.subr.mxu0 0.0
    %651 = vmatpush1.msra.mxu0 0.0
    %652 = vmatprep.subr.mxu0 0.0
    %653 = vmatpush1.msra.mxu0 0.0
    %654 = vmatprep.subr.mxu0 0.0
    %655 = vmatpush1.msra.mxu0 0.0
    %656 = vmatprep.subr.mxu0 0.0
    %657 = vmatpush1.msra.mxu0 0.0
    %658 = vmatprep.subr.mxu0 0.0
    %659 = vmatpush1.msra.mxu0 0.0
    %660 = vmatprep.subr.mxu0 0.0
    %661 = vmatpush1.msra.mxu0 0.0
    %662 = vmatprep.subr.mxu0 0.0
    %663 = vmatpush1.msra.mxu0 0.0
    %664 = vmatprep.subr.mxu0 0.0
    %665 = vmatpush1.msra.mxu0 0.0
    %666 = vmatprep.subr.mxu0 0.0
    %667 = vmatpush1.msra.mxu0 0.0
    %668 = vmatprep.subr.mxu0 0.0
    %669 = vmatpush1.msra.mxu0 0.0
    %670 = vmatprep.subr.mxu0 0.0
    %671 = vmatpush1.msra.mxu0 0.0
    %672 = vmatprep.subr.mxu0 0.0
    %673 = vmatpush1.msra.mxu0 0.0
    %674 = vmatprep.subr.mxu0 0.0
    %675 = vmatpush1.msra.mxu0 0.0
    %676 = vmatprep.subr.mxu0 0.0
    %677 = vmatpush1.msra.mxu0 0.0
    %678 = vmatprep.subr.mxu0 0.0
    %679 = vmatpush1.msra.mxu0 0.0
    %680 = vmatprep.subr.mxu0 0.0
    %681 = vmatpush1.msra.mxu0 0.0
    %682 = vmatprep.subr.mxu0 0.0
    %683 = vmatpush1.msra.mxu0 0.0
    %684 = vmatprep.subr.mxu0 0.0
    %685 = vmatpush1.msra.mxu0 0.0
    %686 = vmatprep.subr.mxu0 0.0
    %687 = vmatpush1.msra.mxu0 0.0
    %688 = vmatprep.subr.mxu0 0.0
    %689 = vmatpush1.msra.mxu0 0.0
    %690 = vmatprep.mubr.f32.mxu0 0.0
    %691 = vmatmul.mubr.f32.gmra.mrb[0].mxu0 %v615
    %v692 = vpop.f32.mrb[0].mxu0
    %v693 = vadd.f32 0.0, %v692
    %v694 = vpop.f32.mrb[0].mxu0
    %695 = vmatprep.mubr.f32.mxu0 0.0
    %696 = vmatmul.mubr.f32.gmra.mrb[0].mxu0 %v618
    %v697 = vpop.f32.mrb[0].mxu0
    %v698 = vadd.f32 0.0, %v697
    %v699 = vpop.f32.mrb[0].mxu0
    %700 = vmatprep.mubr.f32.mxu0 0.0
    %701 = vmatmul.mubr.f32.gmra.mrb[0].mxu0 %v621
    %v702 = vpop.f32.mrb[0].mxu0
    %v703 = vadd.f32 0.0, %v702
    %v704 = vpop.f32.mrb[0].mxu0
    %705 = vmatprep.mubr.f32.mxu0 0.0
    %706 = vmatmul.mubr.f32.gmra.mrb[0].mxu0 %v624
    %v707 = vpop.f32.mrb[0].mxu0
    %v708 = vadd.f32 0.0, %v707
    %v709 = vpop.f32.mrb[0].mxu0
    %710 = vdwg.mxu0
    %v712 = vsel %vm105, %v412, 0
    %714 = vmatprep.subr.mxu0 0.0
    %715 = vmatpush1.msra.mxu0 %v564
    %716 = vmatprep.subr.mxu0 0.0
    %717 = vmatpush1.msra.mxu0 %v569
    %718 = vmatprep.subr.mxu0 0.0
    %719 = vmatpush1.msra.mxu0 %v574
    %720 = vmatprep.subr.mxu0 0.0
    %721 = vmatpush1.msra.mxu0 %v579
    %722 = vmatprep.subr.mxu0 0.0
    %723 = vmatpush1.msra.mxu0 0.0
    %724 = vmatprep.subr.mxu0 0.0
    %725 = vmatpush1.msra.mxu0 0.0
    %726 = vmatprep.subr.mxu0 0.0
    %727 = vmatpush1.msra.mxu0 0.0
    %728 = vmatprep.subr.mxu0 0.0
    %729 = vmatpush1.msra.mxu0 0.0
    %730 = vmatprep.subr.mxu0 0.0
    %731 = vmatpush1.msra.mxu0 0.0
    %732 = vmatprep.subr.mxu0 0.0
    %733 = vmatpush1.msra.mxu0 0.0
    %734 = vmatprep.subr.mxu0 0.0
    %735 = vmatpush1.msra.mxu0 0.0
    %736 = vmatprep.subr.mxu0 0.0
    %737 = vmatpush1.msra.mxu0 0.0
    %738 = vmatprep.subr.mxu0 0.0
    %739 = vmatpush1.msra.mxu0 0.0
    %740 = vmatprep.subr.mxu0 0.0
    %741 = vmatpush1.msra.mxu0 0.0
    %742 = vmatprep.subr.mxu0 0.0
    %743 = vmatpush1.msra.mxu0 0.0
    %744 = vmatprep.subr.mxu0 0.0
    %745 = vmatpush1.msra.mxu0 0.0
    %746 = vmatprep.subr.mxu0 0.0
    %747 = vmatpush1.msra.mxu0 0.0
    %748 = vmatprep.subr.mxu0 0.0
    %749 = vmatpush1.msra.mxu0 0.0
    %750 = vmatprep.subr.mxu0 0.0
    %751 = vmatpush1.msra.mxu0 0.0
    %752 = vmatprep.subr.mxu0 0.0
    %753 = vmatpush1.msra.mxu0 0.0
    %754 = vmatprep.subr.mxu0 0.0
    %755 = vmatpush1.msra.mxu0 0.0
    %756 = vmatprep.subr.mxu0 0.0
    %757 = vmatpush1.msra.mxu0 0.0
    %758 = vmatprep.subr.mxu0 0.0
    %759 = vmatpush1.msra.mxu0 0.0
    %760 = vmatprep.subr.mxu0 0.0
    %761 = vmatpush1.msra.mxu0 0.0
    %762 = vmatprep.subr.mxu0 0.0
    %763 = vmatpush1.msra.mxu0 0.0
    %764 = vmatprep.subr.mxu0 0.0
    %765 = vmatpush1.msra.mxu0 0.0
    %766 = vmatprep.subr.mxu0 0.0
    %767 = vmatpush1.msra.mxu0 0.0
    %768 = vmatprep.subr.mxu0 0.0
    %769 = vmatpush1.msra.mxu0 0.0
    %770 = vmatprep.subr.mxu0 0.0
    %771 = vmatpush1.msra.mxu0 0.0
    %772 = vmatprep.subr.mxu0 0.0
    %773 = vmatpush1.msra.mxu0 0.0
    %774 = vmatprep.subr.mxu0 0.0
    %775 = vmatpush1.msra.mxu0 0.0
    %776 = vmatprep.subr.mxu0 0.0
    %777 = vmatpush1.msra.mxu0 0.0
    %778 = vmatprep.mubr.f32.mxu0 0.0
    %779 = vmatmul.mubr.f32.gmra.mrb[0].mxu0 %v712
    %v780 = vpop.f32.mrb[0].mxu0
    %v781 = vadd.f32 0.0, %v780
    %v782 = vpop.f32.mrb[0].mxu0
    %783 = vdwg.mxu0
    %v785 = vsel %vm105, %v413, 0
    %787 = vmatprep.subr.mxu0 0.0
    %788 = vmatpush1.msra.mxu0 %v693
    %789 = vmatprep.subr.mxu0 0.0
    %790 = vmatpush1.msra.mxu0 %v698
    %791 = vmatprep.subr.mxu0 0.0
    %792 = vmatpush1.msra.mxu0 %v703
    %793 = vmatprep.subr.mxu0 0.0
    %794 = vmatpush1.msra.mxu0 %v708
    %795 = vmatprep.subr.mxu0 0.0
    %796 = vmatpush1.msra.mxu0 0.0
    %797 = vmatprep.subr.mxu0 0.0
    %798 = vmatpush1.msra.mxu0 0.0
    %799 = vmatprep.subr.mxu0 0.0
    %800 = vmatpush1.msra.mxu0 0.0
    %801 = vmatprep.subr.mxu0 0.0
    %802 = vmatpush1.msra.mxu0 0.0
    %803 = vmatprep.subr.mxu0 0.0
    %804 = vmatpush1.msra.mxu0 0.0
    %805 = vmatprep.subr.mxu0 0.0
    %806 = vmatpush1.msra.mxu0 0.0
    %807 = vmatprep.subr.mxu0 0.0
    %808 = vmatpush1.msra.mxu0 0.0
    %809 = vmatprep.subr.mxu0 0.0
    %810 = vmatpush1.msra.mxu0 0.0
    %811 = vmatprep.subr.mxu0 0.0
    %812 = vmatpush1.msra.mxu0 0.0
    %813 = vmatprep.subr.mxu0 0.0
    %814 = vmatpush1.msra.mxu0 0.0
    %815 = vmatprep.subr.mxu0 0.0
    %816 = vmatpush1.msra.mxu0 0.0
    %817 = vmatprep.subr.mxu0 0.0
    %818 = vmatpush1.msra.mxu0 0.0
    %819 = vmatprep.subr.mxu0 0.0
    %820 = vmatpush1.msra.mxu0 0.0
    %821 = vmatprep.subr.mxu0 0.0
    %822 = vmatpush1.msra.mxu0 0.0
    %823 = vmatprep.subr.mxu0 0.0
    %824 = vmatpush1.msra.mxu0 0.0
    %825 = vmatprep.subr.mxu0 0.0
    %826 = vmatpush1.msra.mxu0 0.0
    %827 = vmatprep.subr.mxu0 0.0
    %828 = vmatpush1.msra.mxu0 0.0
    %829 = vmatprep.subr.mxu0 0.0
    %830 = vmatpush1.msra.mxu0 0.0
    %831 = vmatprep.subr.mxu0 0.0
    %832 = vmatpush1.msra.mxu0 0.0
    %833 = vmatprep.subr.mxu0 0.0
    %834 = vmatpush1.msra.mxu0 0.0
    %835 = vmatprep.subr.mxu0 0.0
    %836 = vmatpush1.msra.mxu0 0.0
    %837 = vmatprep.subr.mxu0 0.0
    %838 = vmatpush1.msra.mxu0 0.0
    %839 = vmatprep.subr.mxu0 0.0
    %840 = vmatpush1.msra.mxu0 0.0
    %841 = vmatprep.subr.mxu0 0.0
    %842 = vmatpush1.msra.mxu0 0.0
    %843 = vmatprep.subr.mxu0 0.0
    %844 = vmatpush1.msra.mxu0 0.0
    %845 = vmatprep.subr.mxu0 0.0
    %846 = vmatpush1.msra.mxu0 0.0
    %847 = vmatprep.subr.mxu0 0.0
    %848 = vmatpush1.msra.mxu0 0.0
    %849 = vmatprep.subr.mxu0 0.0
    %850 = vmatpush1.msra.mxu0 0.0
    %851 = vmatprep.mubr.f32.mxu0 0.0
    %852 = vmatmul.mubr.f32.gmra.mrb[0].mxu0 %v785
    %v853 = vpop.f32.mrb[0].mxu0
    %v854 = vadd.f32 0.0, %v853
    %v855 = vpop.f32.mrb[0].mxu0
    %856 = vdwg.mxu0
    %v857 = vld [vmem:[%s7] sm:$0x1]
    %v858 = vld [vmem:[%s8] sm:$0x1]
    %v859 = vsel %vm105, %v781, 0.0
    %860 = vadd.xlane.f32.xlu0 %v859
    %v861 = vpop.xlane.xlu0 %860
    %v862 = vsel %vm105, %v854, 0.0
    %863 = vadd.xlane.f32.xlu0 %v862
    %v864 = vpop.xlane.xlu0 %863
    %v865 = vmul.f32 %v861, %v112
    %v866 = vmul.f32 %v864, %v112
    %v867 = vsub.f32 %v781, %v865
    %v868 = vsub.f32 %v854, %v866
    %v869 = vmul.f32 %v867, %v867
    %v870 = vmul.f32 %v868, %v868
    %v871 = vsel %vm105, %v869, 0.0
    %872 = vadd.xlane.f32.xlu0 %v871
    %v873 = vpop.xlane.xlu0 %872
    %v874 = vsel %vm105, %v870, 0.0
    %875 = vadd.xlane.f32.xlu0 %v874
    %v876 = vpop.xlane.xlu0 %875
    %v877 = vmul.f32 %v873, %v112
    %v878 = vmul.f32 %v876, %v112
    %v879 = vadd.f32 %v877, 1e-05
    %v880 = vadd.f32 %v878, 1e-05
    %v881 = vrsqrt.pop %v879
    %v882 = vrsqrt.pop %v880
    %v883 = vmul.f32 %v867, %v881
    %v884 = vmul.f32 %v868, %v882
    %v886 = vlaneseq
    %v887 = vshrl.u32 %v886, 7
    %v888 = vsub.s32 0, %v887
    %v889 = vrot.slane %v857, %v888
    %v891 = vmul.f32 %v883, %v889
    %v892 = vmul.f32 %v884, %v889
    %v894 = vlaneseq
    %v895 = vshrl.u32 %v894, 7
    %v896 = vsub.s32 0, %v895
    %v897 = vrot.slane %v858, %v896
    %v899 = vadd.f32 %v891, %v897
    %v900 = vadd.f32 %v892, %v897
    %v901 = vld [vmem:[#allocation10] sm:$0xff]
    %v902 = vld [vmem:[#allocation10 + $0x8] sm:$0xff]
    %v903 = vld [vmem:[#allocation10 + $0x10] sm:$0xff]
    %v904 = vld [vmem:[#allocation10 + $0x18] sm:$0xff]
    %v906 = vsel %vm105, %v899, 0
    %v909 = vsel %vm105, %v900, 0
    %911 = vmatprep.subr.mxu0 0.0
    %912 = vmatpush1.msra.mxu0 %v901
    %913 = vmatprep.subr.mxu0 0.0
    %914 = vmatpush1.msra.mxu0 %v902
    %915 = vmatprep.subr.mxu0 0.0
    %916 = vmatpush1.msra.mxu0 %v903
    %917 = vmatprep.subr.mxu0 0.0
    %918 = vmatpush1.msra.mxu0 %v904
    %919 = vmatprep.subr.mxu0 0.0
    %920 = vmatpush1.msra.mxu0 0.0
    %921 = vmatprep.subr.mxu0 0.0
    %922 = vmatpush1.msra.mxu0 0.0
    %923 = vmatprep.subr.mxu0 0.0
    %924 = vmatpush1.msra.mxu0 0.0
    %925 = vmatprep.subr.mxu0 0.0
    %926 = vmatpush1.msra.mxu0 0.0
    %927 = vmatprep.subr.mxu0 0.0
    %928 = vmatpush1.msra.mxu0 0.0
    %929 = vmatprep.subr.mxu0 0.0
    %930 = vmatpush1.msra.mxu0 0.0
    %931 = vmatprep.subr.mxu0 0.0
    %932 = vmatpush1.msra.mxu0 0.0
    %933 = vmatprep.subr.mxu0 0.0
    %934 = vmatpush1.msra.mxu0 0.0
    %935 = vmatprep.subr.mxu0 0.0
    %936 = vmatpush1.msra.mxu0 0.0
    %937 = vmatprep.subr.mxu0 0.0
    %938 = vmatpush1.msra.mxu0 0.0
    %939 = vmatprep.subr.mxu0 0.0
    %940 = vmatpush1.msra.mxu0 0.0
    %941 = vmatprep.subr.mxu0 0.0
    %942 = vmatpush1.msra.mxu0 0.0
    %943 = vmatprep.subr.mxu0 0.0
    %944 = vmatpush1.msra.mxu0 0.0
    %945 = vmatprep.subr.mxu0 0.0
    %946 = vmatpush1.msra.mxu0 0.0
    %947 = vmatprep.subr.mxu0 0.0
    %948 = vmatpush1.msra.mxu0 0.0
    %949 = vmatprep.subr.mxu0 0.0
    %950 = vmatpush1.msra.mxu0 0.0
    %951 = vmatprep.subr.mxu0 0.0
    %952 = vmatpush1.msra.mxu0 0.0
    %953 = vmatprep.subr.mxu0 0.0
    %954 = vmatpush1.msra.mxu0 0.0
    %955 = vmatprep.subr.mxu0 0.0
    %956 = vmatpush1.msra.mxu0 0.0
    %957 = vmatprep.subr.mxu0 0.0
    %958 = vmatpush1.msra.mxu0 0.0
    %959 = vmatprep.subr.mxu0 0.0
    %960 = vmatpush1.msra.mxu0 0.0
    %961 = vmatprep.subr.mxu0 0.0
    %962 = vmatpush1.msra.mxu0 0.0
    %963 = vmatprep.subr.mxu0 0.0
    %964 = vmatpush1.msra.mxu0 0.0
    %965 = vmatprep.subr.mxu0 0.0
    %966 = vmatpush1.msra.mxu0 0.0
    %967 = vmatprep.subr.mxu0 0.0
    %968 = vmatpush1.msra.mxu0 0.0
    %969 = vmatprep.subr.mxu0 0.0
    %970 = vmatpush1.msra.mxu0 0.0
    %971 = vmatprep.subr.mxu0 0.0
    %972 = vmatpush1.msra.mxu0 0.0
    %973 = vmatprep.subr.mxu0 0.0
    %974 = vmatpush1.msra.mxu0 0.0
    %975 = vmatprep.mubr.f32.mxu0 0.0
    %976 = vmatmul.mubr.f32.gmra.mrb[0].mxu0 %v906
    %v977 = vpop.f32.mrb[0].mxu0
    %v978 = vadd.f32 0.0, %v977
    %v979 = vpop.f32.mrb[0].mxu0
    %980 = vmatprep.mubr.f32.mxu0 0.0
    %981 = vmatmul.mubr.f32.gmra.mrb[0].mxu0 %v909
    %v982 = vpop.f32.mrb[0].mxu0
    %v983 = vadd.f32 0.0, %v982
    %v984 = vpop.f32.mrb[0].mxu0
    %985 = vdwg.mxu0
    %986 = vst.msk [vmem:[#allocation11] sm:$0xff] %vm105, %v978
    %987 = vst.msk [vmem:[#allocation11 + $0x8] sm:$0xff] %vm105, %v983
    // Predicated region
    $region58: #{tpu_custom_call.1} parent=1 // pred_check
      _
    $region59: #{tpu_custom_call.1} parent=1 // pred_check_branch
      %989 = sbr.rel (0) target = $region61
    $region60: #{tpu_custom_call.1} parent=1 // pred_region
      %s991 = ssub.s32 256, 256
      %992 = vsyncadd [#allocation4], %s991
      %s993 = sshll.u32 [#allocation11], 4
      %s994 = int_to_ptr.vmem [resolvable:$true] %s993
      %999 = dma.vmem_to_hbm [thread:$0]  %s994, 256, %s9, [#allocation4], 128, 128, 8
    $region61: #{tpu_custom_call.1} parent=1 // pred_fallthru
      _
    // Predicated region
    $region62: #{tpu_custom_call.1} parent=1 // pred_check
      _
    $region63: #{tpu_custom_call.1} parent=1 // pred_check_branch
      %1001 = sbr.rel (0) target = $region65
    $region64: #{tpu_custom_call.1} parent=1 // pred_region
      %1002 = dma.done [#allocation4], 256
    $region65: #{tpu_custom_call.1} parent=1 // pred_fallthru
      _
    %1003 = vsyncpa [#allocation3], 1
    %1004 = vsyncpa [#allocation6], 1
    %1005 = vsyncpa [#allocation9], 1
    %1006 = vsyncpa [#allocation4], 1

</llo_original>
